<compile_context>
chip_gen: v6e
topology: v6e:2x2x1
jax: 0.10.0
libtpu: 0.0.40
codegen_flags: <defaults>
</compile_context>

<pallas_src>
import jax
import jax.numpy as jnp
from jax.experimental import pallas as pl
from jax.experimental.pallas import tpu as pltpu


def _round_up(x, m):
    return (x + m - 1) // m * m


def merge_layer_kernel(x1_ref, x2_ref, w1a_ref, w1b_ref, b1_ref, w2_ref, b2_ref,
                       o_ref):
    mm_dt = w1a_ref.dtype
    # fc1: the concat is fused as two accumulating MXU passes (fp32 accumulate).
    h = jnp.dot(x1_ref[...].astype(mm_dt), w1a_ref[...],
                preferred_element_type=jnp.float32)
    h = h + jnp.dot(x2_ref[...].astype(mm_dt), w1b_ref[...],
                    preferred_element_type=jnp.float32)
    h = jnp.maximum(h + b1_ref[...], 0.0)          # bias + ReLU in fp32 (VPU)
    # fc2: cast fp32 hidden back to the matmul dtype (no-op on the f32 path).
    out = jnp.dot(h.astype(w2_ref.dtype), w2_ref[...],
                  preferred_element_type=jnp.float32)
    o_ref[...] = (out + b2_ref[...]).astype(o_ref.dtype)


def _pick_batch_tile(B, tile_b):
    """Batch tile: multiple of 8 sublanes, preferring (a) exact division of B
    (no batch pad / no post-call slice) and (b) >= 2 grid steps (v7x cores)."""
    if B <= 8:
        return B, B                                  # single full-batch block
    cap = max(8, _round_up(min(tile_b, B), 8))
    if B >= 16:                                      # keep >= 2 grid steps
        cap = min(cap, _round_up((B + 1) // 2, 8))
    cap = _round_up(cap, 8)
    for tb in range(cap, 7, -8):
        if B % tb == 0:
            return tb, B                             # exact tiling
    return cap, _round_up(B, cap)                    # fallback: pad the batch


def merge_layer(x1, x2, w1, b1, w2, b2, *,
                tile_b=1024,
                compute_dtype=jnp.bfloat16,
                out_dtype=None,
                pad_hidden=True):
    """Pallas forward of MergeLayer.

    x1: (B, dim1), x2: (B, dim2)
    w1: (dim1 + dim2, dim3)   b1: (dim3,)    (weights stored (in, out),
    w2: (dim3, dim4)          b2: (dim4,)     i.e. PyTorch Linear.weight.T)
    returns (B, dim4) in out_dtype (default: x1.dtype)
    """
    B, dim1 = x1.shape
    assert x2.shape[0] == B
    dim2 = x2.shape[1]
    kin = dim1 + dim2
    dim3 = w1.shape[1]
    dim4 = w2.shape[1]
    out_dtype = x1.dtype if out_dtype is None else out_dtype

    # Weight-only preprocessing (cheap, one-time): split w1 along K so the
    # concat never materializes; optionally pad the hidden dim to a lane-dense
    # multiple of 128.  Exact: padded b1 entries are 0 (ReLU(0)=0) and padded
    # w2 rows are 0.  The output dim is deliberately left unpadded.
    d3p = _round_up(dim3, 128) if (pad_hidden and dim3 % 128) else dim3
    w1a = jnp.pad(w1[:dim1], ((0, 0), (0, d3p - dim3))).astype(compute_dtype)
    w1b = jnp.pad(w1[dim1:], ((0, 0), (0, d3p - dim3))).astype(compute_dtype)
    b1p = jnp.pad(b1, (0, d3p - dim3)).astype(jnp.float32).reshape(1, d3p)
    w2p = jnp.pad(w2, ((0, d3p - dim3), (0, 0))).astype(compute_dtype)
    b2p = b2.astype(jnp.float32).reshape(1, dim4)

    tb, bp = _pick_batch_tile(B, tile_b)
    if bp != B:
        # Only hit when no multiple-of-8 tile divides B (one extra activation copy).
        x1 = jnp.pad(x1, ((0, bp - B), (0, 0)))
        x2 = jnp.pad(x2, ((0, bp - B), (0, 0)))
    grid = (bp // tb,)

    # VMEM budget: double-buffered streamed tiles + single-buffered resident
    # weights + fp32 hidden, sized against the actual device's VMEM capacity.
    csz = jnp.dtype(compute_dtype).itemsize
    osz = jnp.dtype(out_dtype).itemsize
    w_bytes = (kin * d3p + d3p * dim4) * csz + (d3p + dim4) * 4
    need = (2 * tb * dim1 * x1.dtype.itemsize        # x1 tile, double buffered
            + 2 * tb * dim2 * x2.dtype.itemsize      # x2 tile, double buffered
            + 2 * tb * dim4 * osz                    # out tile, double buffered
            + w_bytes                                # resident weights/biases
            + 2 * tb * d3p * 4)                      # fp32 hidden + cast slack
    try:
        vmem_cap = int(pltpu.get_tpu_info().vmem_capacity_bytes)  # 128 MiB v5e/v6e, 64 MiB v7x
    except Exception:
        vmem_cap = 64 * 1024 * 1024
    vmem_limit = int(min(int(0.85 * vmem_cap),
                         max(2 * need, 8 * 1024 * 1024)))

    flops = 2 * bp * kin * d3p + 2 * bp * d3p * dim4
    bytes_accessed = (bp * dim1 * x1.dtype.itemsize
                      + bp * dim2 * x2.dtype.itemsize
                      + w_bytes
                      + bp * dim4 * osz)

    def _call(weight_mode):
        wkw = {} if weight_mode is None else {"pipeline_mode": weight_mode}
        in_specs = [
            pl.BlockSpec((tb, dim1), lambda i: (i, 0)),           # x1: streamed
            pl.BlockSpec((tb, dim2), lambda i: (i, 0)),           # x2: streamed
            pl.BlockSpec((dim1, d3p), lambda i: (0, 0), **wkw),   # w1[:dim1]: resident
            pl.BlockSpec((dim2, d3p), lambda i: (0, 0), **wkw),   # w1[dim1:]: resident
            pl.BlockSpec((1, d3p), lambda i: (0, 0), **wkw),      # b1: resident
            pl.BlockSpec((d3p, dim4), lambda i: (0, 0), **wkw),   # w2: resident
            pl.BlockSpec((1, dim4), lambda i: (0, 0), **wkw),     # b2: resident
        ]
        return pl.pallas_call(
            merge_layer_kernel,
            out_shape=jax.ShapeDtypeStruct((bp, dim4), out_dtype),
            grid=grid,
            in_specs=in_specs,
            out_specs=pl.BlockSpec((tb, dim4), lambda i: (i, 0)),
            compiler_params=pltpu.CompilerParams(
                dimension_semantics=("parallel",),
                vmem_limit_bytes=vmem_limit),
            cost_estimate=pl.CostEstimate(flops=flops, transcendentals=0,
                                          bytes_accessed=bytes_accessed),
        )(x1, x2, w1a, w1b, b1p, w2p, b2p)

    try:
        # Constant-index weights: single-buffered (halves resident VMEM footprint).
        out = _call(pl.Buffered(1))
    except Exception:
        # Fallback if this Pallas build rejects buffer_count=1.
        out = _call(None)

    return out if bp == B else out[:B]


def reference_forward(x1, x2, w1, b1, w2, b2):
    x = jnp.concatenate([x1, x2], axis=1)
    h = jnp.maximum(x @ w1 + b1, 0.0)
    return h @ w2 + b2


def xavier_normal(key, fan_in, fan_out):
    # torch.nn.init.xavier_normal_: std = sqrt(2 / (fan_in + fan_out))
    std = (2.0 / (fan_in + fan_out)) ** 0.5
    return std * jax.random.normal(key, (fan_in, fan_out), dtype=jnp.float32)


if __name__ == "__main__":
    # Shapes consistent with the module; B=64 exercises a multi-step batch grid
    # (pipelined x1/x2/out DMA + resident single-buffered weights).
    B, dim1, dim2, dim3, dim4 = 64, 16, 16, 32, 8

    key = jax.random.PRNGKey(0)
    k_x1, k_x2, k_w1, k_w2, k_b1, k_b2 = jax.random.split(key, 6)

    x1 = jax.random.normal(k_x1, (B, dim1), dtype=jnp.float32)
    x2 = jax.random.normal(k_x2, (B, dim2), dtype=jnp.float32)

    w1 = xavier_normal(k_w1, dim1 + dim2, dim3)               # (in, out)
    w2 = xavier_normal(k_w2, dim3, dim4)
    bound1 = 1.0 / (dim1 + dim2) ** 0.5
    bound2 = 1.0 / dim3 ** 0.5
    b1 = jax.random.uniform(k_b1, (dim3,), minval=-bound1, maxval=bound1,
                            dtype=jnp.float32)
    b2 = jax.random.uniform(k_b2, (dim4,), minval=-bound2, maxval=bound2,
                            dtype=jnp.float32)

    ref = reference_forward(x1, x2, w1, b1, w2, b2)

    # Exact path: fp32 matmul operands (4 batch grid steps with tile_b=16).
    out_f32 = merge_layer(x1, x2, w1, b1, w2, b2,
                          tile_b=16, compute_dtype=jnp.float32)
    out_f32 = jax.block_until_ready(out_f32)
    assert out_f32.shape == (B, dim4)
    assert jnp.allclose(out_f32, ref, atol=1e-5, rtol=1e-5)

    # Fast path: bf16 matmul operands (cast in-kernel), fp32 accumulation /
    # epilogue.  bf16 operand rounding is intentional -> looser tolerance.
    out_bf16 = merge_layer(x1, x2, w1, b1, w2, b2, compute_dtype=jnp.bfloat16)
    out_bf16 = jax.block_until_ready(out_bf16)
    assert out_bf16.shape == (B, dim4)
    assert jnp.allclose(out_bf16, ref, atol=5e-2, rtol=5e-2)

    print("KERNEL_OK")
</pallas_src>

<mosaic_0001>
module attributes {stable_mosaic.version = 11 : i64} {
  func.func @merge_layer_kernel(%arg0: i32, %arg1: memref<16x16xf32, #tpu.memory_space<vmem>>, %arg2: memref<16x16xf32, #tpu.memory_space<vmem>>, %arg3: memref<16x128xf32, #tpu.memory_space<vmem>>, %arg4: memref<16x128xf32, #tpu.memory_space<vmem>>, %arg5: memref<1x128xf32, #tpu.memory_space<vmem>>, %arg6: memref<128x8xf32, #tpu.memory_space<vmem>>, %arg7: memref<1x8xf32, #tpu.memory_space<vmem>>, %arg8: memref<16x8xf32, #tpu.memory_space<vmem>>) attributes {dimension_semantics = [#tpu.dimension_semantics<parallel>], iteration_bounds = array<i64: 4>, scalar_prefetch = 0 : i64, scratch_operands = 0 : i64, tpu.core_type = #tpu.core_type<tc>, window_params = [{transform_indices = @transform_0, window_bounds = array<i64: 16, 16>}, {transform_indices = @transform_1, window_bounds = array<i64: 16, 16>}, {pipeline_mode = #tpu.pipeline_mode<synchronous>, transform_indices = @transform_2, window_bounds = array<i64: 16, 128>}, {pipeline_mode = #tpu.pipeline_mode<synchronous>, transform_indices = @transform_3, window_bounds = array<i64: 16, 128>}, {pipeline_mode = #tpu.pipeline_mode<synchronous>, transform_indices = @transform_4, window_bounds = array<i64: 1, 128>}, {pipeline_mode = #tpu.pipeline_mode<synchronous>, transform_indices = @transform_5, window_bounds = array<i64: 128, 8>}, {pipeline_mode = #tpu.pipeline_mode<synchronous>, transform_indices = @transform_6, window_bounds = array<i64: 1, 8>}, {transform_indices = @transform_7, window_bounds = array<i64: 16, 8>}]} {
    %c0 = arith.constant 0 : index
    %c0_0 = arith.constant 0 : index
    %0 = vector.load %arg1[%c0, %c0_0] : memref<16x16xf32, #tpu.memory_space<vmem>>, vector<16x16xf32>
    %c0_1 = arith.constant 0 : index
    %c0_2 = arith.constant 0 : index
    %1 = vector.load %arg3[%c0_1, %c0_2] : memref<16x128xf32, #tpu.memory_space<vmem>>, vector<16x128xf32>
    %cst = arith.constant dense<0.000000e+00> : vector<16x128xf32>
    %2 = tpu.matmul %0, %1, %cst {dimension_numbers = #tpu.dot_dimension_numbers<[1], [0], [0], [1], [0, 0, 1, 1], [], []>} : vector<16x16xf32>, vector<16x128xf32>, vector<16x128xf32> -> vector<16x128xf32>
    %c0_3 = arith.constant 0 : index
    %c0_4 = arith.constant 0 : index
    %3 = vector.load %arg2[%c0_3, %c0_4] : memref<16x16xf32, #tpu.memory_space<vmem>>, vector<16x16xf32>
    %c0_5 = arith.constant 0 : index
    %c0_6 = arith.constant 0 : index
    %4 = vector.load %arg4[%c0_5, %c0_6] : memref<16x128xf32, #tpu.memory_space<vmem>>, vector<16x128xf32>
    %cst_7 = arith.constant dense<0.000000e+00> : vector<16x128xf32>
    %5 = tpu.matmul %3, %4, %cst_7 {dimension_numbers = #tpu.dot_dimension_numbers<[1], [0], [0], [1], [0, 0, 1, 1], [], []>} : vector<16x16xf32>, vector<16x128xf32>, vector<16x128xf32> -> vector<16x128xf32>
    %6 = arith.addf %2, %5 : vector<16x128xf32>
    %c0_8 = arith.constant 0 : index
    %c0_9 = arith.constant 0 : index
    %7 = vector.load %arg5[%c0_8, %c0_9] : memref<1x128xf32, #tpu.memory_space<vmem>>, vector<1x128xf32>
    %8 = vector.broadcast %7 : vector<1x128xf32> to vector<16x128xf32>
    %9 = arith.addf %6, %8 : vector<16x128xf32>
    %cst_10 = arith.constant 0.000000e+00 : f32
    %10 = vector.broadcast %cst_10 : f32 to vector<16x128xf32>
    %11 = arith.maximumf %9, %10 : vector<16x128xf32>
    %c0_11 = arith.constant 0 : index
    %c0_12 = arith.constant 0 : index
    %12 = vector.load %arg6[%c0_11, %c0_12] : memref<128x8xf32, #tpu.memory_space<vmem>>, vector<128x8xf32>
    %cst_13 = arith.constant dense<0.000000e+00> : vector<16x8xf32>
    %13 = tpu.matmul %11, %12, %cst_13 {dimension_numbers = #tpu.dot_dimension_numbers<[1], [0], [0], [1], [0, 0, 1, 1], [], []>} : vector<16x128xf32>, vector<128x8xf32>, vector<16x8xf32> -> vector<16x8xf32>
    %c0_14 = arith.constant 0 : index
    %c0_15 = arith.constant 0 : index
    %14 = vector.load %arg7[%c0_14, %c0_15] : memref<1x8xf32, #tpu.memory_space<vmem>>, vector<1x8xf32>
    %15 = vector.broadcast %14 : vector<1x8xf32> to vector<16x8xf32>
    %16 = arith.addf %13, %15 : vector<16x8xf32>
    %c0_16 = arith.constant 0 : index
    %c0_17 = arith.constant 0 : index
    %17 = vector.load %arg8[%c0_16, %c0_17] : memref<16x8xf32, #tpu.memory_space<vmem>>, vector<16x8xf32>
    tpu.vector_store %arg8[%c0_16, %c0_17], %16 {strides = array<i32>} : memref<16x8xf32, #tpu.memory_space<vmem>>, vector<16x8xf32>,
    return
  }
  func.func @transform_0(%arg0: i32) -> (i32, i32) {
    %c0_i32 = arith.constant 0 : i32
    %c0_i32_0 = arith.constant 0 : i32
    return %arg0, %c0_i32 : i32, i32
  }
  func.func @transform_1(%arg0: i32) -> (i32, i32) {
    %c0_i32 = arith.constant 0 : i32
    %c0_i32_0 = arith.constant 0 : i32
    return %arg0, %c0_i32 : i32, i32
  }
  func.func @transform_2(%arg0: i32) -> (i32, i32) {
    %c0_i32 = arith.constant 0 : i32
    %c0_i32_0 = arith.constant 0 : i32
    %c0_i32_1 = arith.constant 0 : i32
    return %c0_i32, %c0_i32_0 : i32, i32
  }
  func.func @transform_3(%arg0: i32) -> (i32, i32) {
    %c0_i32 = arith.constant 0 : i32
    %c0_i32_0 = arith.constant 0 : i32
    %c0_i32_1 = arith.constant 0 : i32
    return %c0_i32, %c0_i32_0 : i32, i32
  }
  func.func @transform_4(%arg0: i32) -> (i32, i32) {
    %c0_i32 = arith.constant 0 : i32
    %c0_i32_0 = arith.constant 0 : i32
    %c0_i32_1 = arith.constant 0 : i32
    return %c0_i32, %c0_i32_0 : i32, i32
  }
  func.func @transform_5(%arg0: i32) -> (i32, i32) {
    %c0_i32 = arith.constant 0 : i32
    %c0_i32_0 = arith.constant 0 : i32
    %c0_i32_1 = arith.constant 0 : i32
    return %c0_i32, %c0_i32_0 : i32, i32
  }
  func.func @transform_6(%arg0: i32) -> (i32, i32) {
    %c0_i32 = arith.constant 0 : i32
    %c0_i32_0 = arith.constant 0 : i32
    %c0_i32_1 = arith.constant 0 : i32
    return %c0_i32, %c0_i32_0 : i32, i32
  }
  func.func @transform_7(%arg0: i32) -> (i32, i32) {
    %c0_i32 = arith.constant 0 : i32
    %c0_i32_0 = arith.constant 0 : i32
    return %arg0, %c0_i32 : i32, i32
  }
}

module attributes {stable_mosaic.version = 11 : i64} {
  func.func @merge_layer_kernel(%arg0: i32, %arg1: memref<16x16xf32, #tpu.memory_space<vmem>>, %arg2: memref<16x16xf32, #tpu.memory_space<vmem>>, %arg3: memref<16x128xf32, #tpu.memory_space<vmem>>, %arg4: memref<16x128xf32, #tpu.memory_space<vmem>>, %arg5: memref<1x128xf32, #tpu.memory_space<vmem>>, %arg6: memref<128x8xf32, #tpu.memory_space<vmem>>, %arg7: memref<1x8xf32, #tpu.memory_space<vmem>>, %arg8: memref<16x8xf32, #tpu.memory_space<vmem>>) attributes {dimension_semantics = [#tpu.dimension_semantics<parallel>], iteration_bounds = array<i64: 4>, scalar_prefetch = 0 : i64, scratch_operands = 0 : i64, tpu.core_type = #tpu.core_type<tc>, window_params = [{transform_indices = @transform_0, window_bounds = array<i64: 16, 16>}, {transform_indices = @transform_1, window_bounds = array<i64: 16, 16>}, {pipeline_mode = #tpu.pipeline_mode<synchronous>, transform_indices = @transform_2, window_bounds = array<i64: 16, 128>}, {pipeline_mode = #tpu.pipeline_mode<synchronous>, transform_indices = @transform_3, window_bounds = array<i64: 16, 128>}, {pipeline_mode = #tpu.pipeline_mode<synchronous>, transform_indices = @transform_4, window_bounds = array<i64: 1, 128>}, {pipeline_mode = #tpu.pipeline_mode<synchronous>, transform_indices = @transform_5, window_bounds = array<i64: 128, 8>}, {pipeline_mode = #tpu.pipeline_mode<synchronous>, transform_indices = @transform_6, window_bounds = array<i64: 1, 8>}, {transform_indices = @transform_7, window_bounds = array<i64: 16, 8>}]} {
    %c0 = arith.constant 0 : index
    %c0_0 = arith.constant 0 : index
    %0 = vector.load %arg1[%c0, %c0_0] : memref<16x16xf32, #tpu.memory_space<vmem>>, vector<16x16xf32>
    %c0_1 = arith.constant 0 : index
    %c0_2 = arith.constant 0 : index
    %1 = vector.load %arg3[%c0_1, %c0_2] : memref<16x128xf32, #tpu.memory_space<vmem>>, vector<16x128xf32>
    %cst = arith.constant dense<0.000000e+00> : vector<16x128xf32>
    %2 = tpu.matmul %0, %1, %cst {dimension_numbers = #tpu.dot_dimension_numbers<[1], [0], [0], [1], [0, 0, 1, 1], [], []>} : vector<16x16xf32>, vector<16x128xf32>, vector<16x128xf32> -> vector<16x128xf32>
    %c0_3 = arith.constant 0 : index
    %c0_4 = arith.constant 0 : index
    %3 = vector.load %arg2[%c0_3, %c0_4] : memref<16x16xf32, #tpu.memory_space<vmem>>, vector<16x16xf32>
    %c0_5 = arith.constant 0 : index
    %c0_6 = arith.constant 0 : index
    %4 = vector.load %arg4[%c0_5, %c0_6] : memref<16x128xf32, #tpu.memory_space<vmem>>, vector<16x128xf32>
    %cst_7 = arith.constant dense<0.000000e+00> : vector<16x128xf32>
    %5 = tpu.matmul %3, %4, %cst_7 {dimension_numbers = #tpu.dot_dimension_numbers<[1], [0], [0], [1], [0, 0, 1, 1], [], []>} : vector<16x16xf32>, vector<16x128xf32>, vector<16x128xf32> -> vector<16x128xf32>
    %6 = arith.addf %2, %5 : vector<16x128xf32>
    %c0_8 = arith.constant 0 : index
    %c0_9 = arith.constant 0 : index
    %7 = vector.load %arg5[%c0_8, %c0_9] : memref<1x128xf32, #tpu.memory_space<vmem>>, vector<1x128xf32>
    %8 = vector.broadcast %7 : vector<1x128xf32> to vector<16x128xf32>
    %9 = arith.addf %6, %8 : vector<16x128xf32>
    %cst_10 = arith.constant 0.000000e+00 : f32
    %10 = vector.broadcast %cst_10 : f32 to vector<16x128xf32>
    %11 = arith.maximumf %9, %10 : vector<16x128xf32>
    %c0_11 = arith.constant 0 : index
    %c0_12 = arith.constant 0 : index
    %12 = vector.load %arg6[%c0_11, %c0_12] : memref<128x8xf32, #tpu.memory_space<vmem>>, vector<128x8xf32>
    %cst_13 = arith.constant dense<0.000000e+00> : vector<16x8xf32>
    %13 = tpu.matmul %11, %12, %cst_13 {dimension_numbers = #tpu.dot_dimension_numbers<[1], [0], [0], [1], [0, 0, 1, 1], [], []>} : vector<16x128xf32>, vector<128x8xf32>, vector<16x8xf32> -> vector<16x8xf32>
    %c0_14 = arith.constant 0 : index
    %c0_15 = arith.constant 0 : index
    %14 = vector.load %arg7[%c0_14, %c0_15] : memref<1x8xf32, #tpu.memory_space<vmem>>, vector<1x8xf32>
    %15 = vector.broadcast %14 : vector<1x8xf32> to vector<16x8xf32>
    %16 = arith.addf %13, %15 : vector<16x8xf32>
    %c0_16 = arith.constant 0 : index
    %c0_17 = arith.constant 0 : index
    %17 = vector.load %arg8[%c0_16, %c0_17] : memref<16x8xf32, #tpu.memory_space<vmem>>, vector<16x8xf32>
    tpu.vector_store %arg8[%c0_16, %c0_17], %16 {strides = array<i32>} : memref<16x8xf32, #tpu.memory_space<vmem>>, vector<16x8xf32>,
    return
  }
  func.func @transform_0(%arg0: i32) -> (i32, i32) {
    %c0_i32 = arith.constant 0 : i32
    %c0_i32_0 = arith.constant 0 : i32
    return %arg0, %c0_i32 : i32, i32
  }
  func.func @transform_1(%arg0: i32) -> (i32, i32) {
    %c0_i32 = arith.constant 0 : i32
    %c0_i32_0 = arith.constant 0 : i32
    return %arg0, %c0_i32 : i32, i32
  }
  func.func @transform_2(%arg0: i32) -> (i32, i32) {
    %c0_i32 = arith.constant 0 : i32
    %c0_i32_0 = arith.constant 0 : i32
    %c0_i32_1 = arith.constant 0 : i32
    return %c0_i32, %c0_i32_0 : i32, i32
  }
  func.func @transform_3(%arg0: i32) -> (i32, i32) {
    %c0_i32 = arith.constant 0 : i32
    %c0_i32_0 = arith.constant 0 : i32
    %c0_i32_1 = arith.constant 0 : i32
    return %c0_i32, %c0_i32_0 : i32, i32
  }
  func.func @transform_4(%arg0: i32) -> (i32, i32) {
    %c0_i32 = arith.constant 0 : i32
    %c0_i32_0 = arith.constant 0 : i32
    %c0_i32_1 = arith.constant 0 : i32
    return %c0_i32, %c0_i32_0 : i32, i32
  }
  func.func @transform_5(%arg0: i32) -> (i32, i32) {
    %c0_i32 = arith.constant 0 : i32
    %c0_i32_0 = arith.constant 0 : i32
    %c0_i32_1 = arith.constant 0 : i32
    return %c0_i32, %c0_i32_0 : i32, i32
  }
  func.func @transform_6(%arg0: i32) -> (i32, i32) {
    %c0_i32 = arith.constant 0 : i32
    %c0_i32_0 = arith.constant 0 : i32
    %c0_i32_1 = arith.constant 0 : i32
    return %c0_i32, %c0_i32_0 : i32, i32
  }
  func.func @transform_7(%arg0: i32) -> (i32, i32) {
    %c0_i32 = arith.constant 0 : i32
    %c0_i32_0 = arith.constant 0 : i32
    return %arg0, %c0_i32 : i32, i32
  }
}

</mosaic_0001>

<llo_original>
// kernel: tpu_custom_call.1
$region0: #{tpu_custom_call.1}
  #allocation0 [shape = 'u32[]', space=smem, size = 0x4, offset = 0x4, fixed_abs, tag = 'smem constant byte address 0x4 - core index']
  #allocation1 [shape = 'u32[144,128]{1,0:T(1,128)}', space=vmem, size = 0x12000, scoped, tag = 'internal scratch']
  %s0 = inlined_call_operand.vmem [shape: f32[64,16], index: 0, kind: input, shape index: {}]
  %s1 = inlined_call_operand.vmem [shape: f32[64,16], index: 1, kind: input, shape index: {}]
  %s2 = inlined_call_operand.vmem [shape: f32[16,128], index: 2, kind: input, shape index: {}]
  %s3 = inlined_call_operand.vmem [shape: f32[16,128], index: 3, kind: input, shape index: {}]
  %s4 = inlined_call_operand.vmem [shape: f32[1,128], index: 4, kind: input, shape index: {}]
  %s5 = inlined_call_operand.vmem [shape: f32[128,8], index: 5, kind: input, shape index: {}]
  %s6 = inlined_call_operand.vmem [shape: f32[1,8], index: 6, kind: input, shape index: {}]
  %s7 = inlined_call_operand.vmem [shape: f32[64,8], index: 7, kind: output, shape index: {}]
  %s8 = sld [smem:[#allocation0]]
  $region61: #{tpu_custom_call.1} parent=0
    _
  %s10 = ssub.s32 1, %s8
  %s11 = scalar_select 0, %s10, %s8
  loop: start=0, step=1, limit=6
  $region2: #{tpu_custom_call.1} parent=0 // loop_pre_header
    _
  $region3: #{tpu_custom_call.1} parent=0 // loop_header
    %s13 = sphi 0, %s17
    %p14 = scmp.ge.s32.totalorder %s13, 6
    %s23 = sphi 0, %s25
    %s26 = sphi 0, %s23
    %s27 = sphi 0, %s26
    %s43 = sphi 0, %s27
    %s49 = sphi 0, %s51
    %s52 = sphi 0, %s49
    %s53 = sphi 0, %s52
    %s69 = sphi 0, %s53
    %s73 = sphi 0, %s73
    %s75 = sphi 0, %s73
    %s76 = sphi 0, %s75
    %s90 = sphi 0, %s76
    %s94 = sphi 0, %s94
    %s96 = sphi 0, %s94
    %s97 = sphi 0, %s96
    %s111 = sphi 0, %s97
    %s115 = sphi 0, %s115
    %s117 = sphi 0, %s115
    %s118 = sphi 0, %s117
    %s132 = sphi 0, %s118
    %s136 = sphi 0, %s136
    %s138 = sphi 0, %s136
    %s139 = sphi 0, %s138
    %s153 = sphi 0, %s139
    %s157 = sphi 0, %s157
    %s159 = sphi 0, %s157
    %s160 = sphi 0, %s159
    %s174 = sphi 0, %s160
    %s180 = sphi 0, %s182
    %s183 = sphi 0, %s180
    %s184 = sphi 0, %s183
    %s200 = sphi 0, %s184
  $region4: #{tpu_custom_call.1} parent=0 // loop_header_branch
    %16 = sbr.rel (%p14) target = $region8
  $region5: #{tpu_custom_call.1} parent=0 // loop_body
    %s18 = ssub.s32 %s13, 1
    %s19 = ssub.s32 %s13, 2
    %s20 = sadd.s32 %s13, 1
    %s21 = ssub.s32 %s13, %s20
    %p22 = scmp.eq.s32.totalorder %s21, 0
    %s24 = sadd.s32 %s23, 1
    %s25 = scalar_select %p22, %s23, %s24
    %p28 = pneg %p22
    %p29 = scmp.eq.s32.totalorder %s13, 3
    %p30 = por %p28, %p29
    %p31 = scmp.ne.s32.totalorder %s23, %s26
    %p32 = scmp.eq.s32.totalorder %s13, 0
    %p33 = por %p31, %p32
    %p34 = scmp.ne.s32.totalorder %s23, %s26
    %p35 = scmp.eq.s32.totalorder %s18, 3
    %p36 = por %p34, %p35
    %p37 = scmp.ne.s32.totalorder %s26, %s27
    %p38 = scmp.eq.s32.totalorder %s18, 0
    %p39 = por %p37, %p38
    %p40 = scmp.ne.s32.totalorder %s26, %s27
    %p41 = scmp.eq.s32.totalorder %s19, 3
    %p42 = por %p40, %p41
    %p44 = scmp.ne.s32.totalorder %s27, %s43
    %p45 = scmp.eq.s32.totalorder %s19, 0
    %p46 = por %p44, %p45
    %s47 = ssub.s32 %s13, %s20
    %p48 = scmp.eq.s32.totalorder %s47, 0
    %s50 = sadd.s32 %s49, 1
    %s51 = scalar_select %p48, %s49, %s50
    %p54 = pneg %p48
    %p55 = scmp.eq.s32.totalorder %s13, 3
    %p56 = por %p54, %p55
    %p57 = scmp.ne.s32.totalorder %s49, %s52
    %p58 = scmp.eq.s32.totalorder %s13, 0
    %p59 = por %p57, %p58
    %p60 = scmp.ne.s32.totalorder %s49, %s52
    %p61 = scmp.eq.s32.totalorder %s18, 3
    %p62 = por %p60, %p61
    %p63 = scmp.ne.s32.totalorder %s52, %s53
    %p64 = scmp.eq.s32.totalorder %s18, 0
    %p65 = por %p63, %p64
    %p66 = scmp.ne.s32.totalorder %s52, %s53
    %p67 = scmp.eq.s32.totalorder %s19, 3
    %p68 = por %p66, %p67
    %p70 = scmp.ne.s32.totalorder %s53, %s69
    %p71 = scmp.eq.s32.totalorder %s19, 0
    %p72 = por %p70, %p71
    %s74 = sadd.s32 %s73, 1
    %p77 = scmp.eq.s32.totalorder %s13, 3
    %p78 = scmp.ne.s32.totalorder %s73, %s75
    %p79 = scmp.eq.s32.totalorder %s13, 0
    %p80 = por %p78, %p79
    %p81 = scmp.ne.s32.totalorder %s73, %s75
    %p82 = scmp.eq.s32.totalorder %s18, 3
    %p83 = por %p81, %p82
    %p84 = scmp.ne.s32.totalorder %s75, %s76
    %p85 = scmp.eq.s32.totalorder %s18, 0
    %p86 = por %p84, %p85
    %p87 = scmp.ne.s32.totalorder %s75, %s76
    %p88 = scmp.eq.s32.totalorder %s19, 3
    %p89 = por %p87, %p88
    %p91 = scmp.ne.s32.totalorder %s76, %s90
    %p92 = scmp.eq.s32.totalorder %s19, 0
    %p93 = por %p91, %p92
    %s95 = sadd.s32 %s94, 1
    %p98 = scmp.eq.s32.totalorder %s13, 3
    %p99 = scmp.ne.s32.totalorder %s94, %s96
    %p100 = scmp.eq.s32.totalorder %s13, 0
    %p101 = por %p99, %p100
    %p102 = scmp.ne.s32.totalorder %s94, %s96
    %p103 = scmp.eq.s32.totalorder %s18, 3
    %p104 = por %p102, %p103
    %p105 = scmp.ne.s32.totalorder %s96, %s97
    %p106 = scmp.eq.s32.totalorder %s18, 0
    %p107 = por %p105, %p106
    %p108 = scmp.ne.s32.totalorder %s96, %s97
    %p109 = scmp.eq.s32.totalorder %s19, 3
    %p110 = por %p108, %p109
    %p112 = scmp.ne.s32.totalorder %s97, %s111
    %p113 = scmp.eq.s32.totalorder %s19, 0
    %p114 = por %p112, %p113
    %s116 = sadd.s32 %s115, 1
    %p119 = scmp.eq.s32.totalorder %s13, 3
    %p120 = scmp.ne.s32.totalorder %s115, %s117
    %p121 = scmp.eq.s32.totalorder %s13, 0
    %p122 = por %p120, %p121
    %p123 = scmp.ne.s32.totalorder %s115, %s117
    %p124 = scmp.eq.s32.totalorder %s18, 3
    %p125 = por %p123, %p124
    %p126 = scmp.ne.s32.totalorder %s117, %s118
    %p127 = scmp.eq.s32.totalorder %s18, 0
    %p128 = por %p126, %p127
    %p129 = scmp.ne.s32.totalorder %s117, %s118
    %p130 = scmp.eq.s32.totalorder %s19, 3
    %p131 = por %p129, %p130
    %p133 = scmp.ne.s32.totalorder %s118, %s132
    %p134 = scmp.eq.s32.totalorder %s19, 0
    %p135 = por %p133, %p134
    %s137 = sadd.s32 %s136, 1
    %p140 = scmp.eq.s32.totalorder %s13, 3
    %p141 = scmp.ne.s32.totalorder %s136, %s138
    %p142 = scmp.eq.s32.totalorder %s13, 0
    %p143 = por %p141, %p142
    %p144 = scmp.ne.s32.totalorder %s136, %s138
    %p145 = scmp.eq.s32.totalorder %s18, 3
    %p146 = por %p144, %p145
    %p147 = scmp.ne.s32.totalorder %s138, %s139
    %p148 = scmp.eq.s32.totalorder %s18, 0
    %p149 = por %p147, %p148
    %p150 = scmp.ne.s32.totalorder %s138, %s139
    %p151 = scmp.eq.s32.totalorder %s19, 3
    %p152 = por %p150, %p151
    %p154 = scmp.ne.s32.totalorder %s139, %s153
    %p155 = scmp.eq.s32.totalorder %s19, 0
    %p156 = por %p154, %p155
    %s158 = sadd.s32 %s157, 1
    %p161 = scmp.eq.s32.totalorder %s13, 3
    %p162 = scmp.ne.s32.totalorder %s157, %s159
    %p163 = scmp.eq.s32.totalorder %s13, 0
    %p164 = por %p162, %p163
    %p165 = scmp.ne.s32.totalorder %s157, %s159
    %p166 = scmp.eq.s32.totalorder %s18, 3
    %p167 = por %p165, %p166
    %p168 = scmp.ne.s32.totalorder %s159, %s160
    %p169 = scmp.eq.s32.totalorder %s18, 0
    %p170 = por %p168, %p169
    %p171 = scmp.ne.s32.totalorder %s159, %s160
    %p172 = scmp.eq.s32.totalorder %s19, 3
    %p173 = por %p171, %p172
    %p175 = scmp.ne.s32.totalorder %s160, %s174
    %p176 = scmp.eq.s32.totalorder %s19, 0
    %p177 = por %p175, %p176
    %s178 = ssub.s32 %s13, %s20
    %p179 = scmp.eq.s32.totalorder %s178, 0
    %s181 = sadd.s32 %s180, 1
    %s182 = scalar_select %p179, %s180, %s181
    %p185 = pneg %p179
    %p186 = scmp.eq.s32.totalorder %s13, 3
    %p187 = por %p185, %p186
    %p188 = scmp.ne.s32.totalorder %s180, %s183
    %p189 = scmp.eq.s32.totalorder %s13, 0
    %p190 = por %p188, %p189
    %p191 = scmp.ne.s32.totalorder %s180, %s183
    %p192 = scmp.eq.s32.totalorder %s18, 3
    %p193 = por %p191, %p192
    %p194 = scmp.ne.s32.totalorder %s183, %s184
    %p195 = scmp.eq.s32.totalorder %s18, 0
    %p196 = por %p194, %p195
    %p197 = scmp.ne.s32.totalorder %s183, %s184
    %p198 = scmp.eq.s32.totalorder %s19, 3
    %p199 = por %p197, %p198
    %p201 = scmp.ne.s32.totalorder %s184, %s200
    %p202 = scmp.eq.s32.totalorder %s19, 0
    %p203 = por %p201, %p202
    %p204 = scmp.le.s32.totalorder 1, %s13
    %p205 = scmp.lt.s32.totalorder %s13, 5
    %p206 = pnand %p204, %p205
    %p207 = pneg %p206
    // Predicated region
    $region9: #{tpu_custom_call.1} parent=5 // pred_check
      _
    $region10: #{tpu_custom_call.1} parent=5 // pred_check_branch
      %209 = sbr.rel (%p206) target = $region12
    $region11: #{tpu_custom_call.1} parent=5 // pred_region
      %s210 = ssub.s32 %s13, 1
      // Predicated region
      $region13: #{tpu_custom_call.1} parent=11 // pred_check
        %p211 = pneg %p86
      $region14: #{tpu_custom_call.1} parent=11 // pred_check_branch
        %213 = sbr.rel (%p211) target = $region16
      $region15: #{tpu_custom_call.1} parent=11 // pred_region
        _
      $region16: #{tpu_custom_call.1} parent=11 // pred_fallthru
        _
      // Predicated region
      $region17: #{tpu_custom_call.1} parent=11 // pred_check
        %p214 = pneg %p107
      $region18: #{tpu_custom_call.1} parent=11 // pred_check_branch
        %216 = sbr.rel (%p214) target = $region20
      $region19: #{tpu_custom_call.1} parent=11 // pred_region
        _
      $region20: #{tpu_custom_call.1} parent=11 // pred_fallthru
        _
      // Predicated region
      $region21: #{tpu_custom_call.1} parent=11 // pred_check
        %p217 = pneg %p128
      $region22: #{tpu_custom_call.1} parent=11 // pred_check_branch
        %219 = sbr.rel (%p217) target = $region24
      $region23: #{tpu_custom_call.1} parent=11 // pred_region
        _
      $region24: #{tpu_custom_call.1} parent=11 // pred_fallthru
        _
      // Predicated region
      $region25: #{tpu_custom_call.1} parent=11 // pred_check
        %p220 = pneg %p149
      $region26: #{tpu_custom_call.1} parent=11 // pred_check_branch
        %222 = sbr.rel (%p220) target = $region28
      $region27: #{tpu_custom_call.1} parent=11 // pred_region
        _
      $region28: #{tpu_custom_call.1} parent=11 // pred_fallthru
        _
      // Predicated region
      $region29: #{tpu_custom_call.1} parent=11 // pred_check
        %p223 = pneg %p170
      $region30: #{tpu_custom_call.1} parent=11 // pred_check_branch
        %225 = sbr.rel (%p223) target = $region32
      $region31: #{tpu_custom_call.1} parent=11 // pred_region
        _
      $region32: #{tpu_custom_call.1} parent=11 // pred_fallthru
        _
    $region12: #{tpu_custom_call.1} parent=5 // pred_fallthru
      _
    %p226 = scmp.lt.s32.totalorder %s13, 4
    // Predicated region
    $region33: #{tpu_custom_call.1} parent=5 // pred_check
      %p227 = pneg %p226
    $region34: #{tpu_custom_call.1} parent=5 // pred_check_branch
      %229 = sbr.rel (%p227) target = $region36
    $region35: #{tpu_custom_call.1} parent=5 // pred_region
      // Predicated region
      $region37: #{tpu_custom_call.1} parent=35 // pred_check
        %p230 = pneg %p33
      $region38: #{tpu_custom_call.1} parent=35 // pred_check_branch
        %232 = sbr.rel (%p230) target = $region40
      $region39: #{tpu_custom_call.1} parent=35 // pred_region
        %s233 = smul.u32 2, %s13
        %p234 = scmp.lt.s32.totalorder %s233, 7
        %s235 = scalar_select %p234, %s233, 7
        %s236 = smul.addr %s235, 8
        %s237 = scalar_lea.vmem %s0, %s236
        %s238 = smul.u32 2, %s13
      $region40: #{tpu_custom_call.1} parent=35 // pred_fallthru
        _
      // Predicated region
      $region41: #{tpu_custom_call.1} parent=35 // pred_check
        %p239 = pneg %p59
      $region42: #{tpu_custom_call.1} parent=35 // pred_check_branch
        %241 = sbr.rel (%p239) target = $region44
      $region43: #{tpu_custom_call.1} parent=35 // pred_region
        %s242 = smul.u32 2, %s13
        %p243 = scmp.lt.s32.totalorder %s242, 7
        %s244 = scalar_select %p243, %s242, 7
        %s245 = smul.addr %s244, 8
        %s246 = scalar_lea.vmem %s1, %s245
        %s247 = smul.u32 2, %s13
      $region44: #{tpu_custom_call.1} parent=35 // pred_fallthru
        _
    $region36: #{tpu_custom_call.1} parent=5 // pred_fallthru
      _
    %p248 = scmp.le.s32.totalorder 1, %s13
    %p249 = scmp.lt.s32.totalorder %s13, 5
    %p250 = pnand %p248, %p249
    %p251 = pneg %p250
    // Predicated region
    $region45: #{tpu_custom_call.1} parent=5 // pred_check
      _
    $region46: #{tpu_custom_call.1} parent=5 // pred_check_branch
      %253 = sbr.rel (%p250) target = $region48
    $region47: #{tpu_custom_call.1} parent=5 // pred_region
      %s254 = ssub.s32 %s13, 1
      %s255 = smul.u32 2, %s18
      %p256 = scmp.lt.s32.totalorder %s255, 7
      %s257 = scalar_select %p256, %s255, 7
      %s258 = smul.addr %s257, 8
      %s259 = scalar_lea.vmem %s0, %s258
      %p260 = pneg %p39
      %p261 = pneg %p36
      %s262 = smul.u32 2, %s18
      %p263 = scmp.lt.s32.totalorder %s262, 7
      %s264 = scalar_select %p263, %s262, 7
      %s265 = smul.addr %s264, 8
      %s266 = scalar_lea.vmem %s1, %s265
      %p267 = pneg %p65
      %p268 = pneg %p62
      %p269 = pneg %p86
      %p270 = pneg %p83
      %p271 = pneg %p107
      %p272 = pneg %p104
      %p273 = pneg %p128
      %p274 = pneg %p125
      %p275 = pneg %p149
      %p276 = pneg %p146
      %p277 = pneg %p170
      %p278 = pneg %p167
      %p279 = pneg %p196
      %p280 = pneg %p193
      %s281 = smul.u32 2, %s18
      %p282 = scmp.lt.s32.totalorder %s281, 7
      %s283 = scalar_select %p282, %s281, 7
      %s284 = smul.addr %s283, 8
      %s285 = scalar_lea.vmem %s7, %s284
      %s286 = smul.u32 2, %s18
      %p287 = scmp.lt.s32.totalorder %s286, 7
      %s288 = scalar_select %p287, %s286, 7
      %s289 = smul.addr %s288, 8
      %s290 = scalar_lea.vmem %s0, %s289
      %s291 = smul.u32 2, %s18
      %s292 = smul.u32 2, %s18
      %p293 = scmp.lt.s32.totalorder %s292, 7
      %s294 = scalar_select %p293, %s292, 7
      %s295 = smul.addr %s294, 8
      %s296 = scalar_lea.vmem %s1, %s295
      %s297 = smul.u32 2, %s18
      %s298 = smul.u32 2, %s18
      %p299 = scmp.lt.s32.totalorder %s298, 7
      %s300 = scalar_select %p299, %s298, 7
      %s301 = smul.addr %s300, 8
      %s302 = scalar_lea.vmem %s7, %s301
      %s303 = smul.u32 2, %s18
      %v304 = vld [vmem:[%s290] sm:$0xff]
      %v305 = vld [vmem:[%s290 + $0x8] sm:$0xff]
      %v306 = vld [vmem:[%s2] sm:$0xff]
      %v307 = vld [vmem:[%s2 + $0x8] sm:$0xff]
      %v308 = vld [vmem:[%s296] sm:$0xff]
      %v309 = vld [vmem:[%s296 + $0x8] sm:$0xff]
      %v310 = vld [vmem:[%s3] sm:$0xff]
      %v311 = vld [vmem:[%s3 + $0x8] sm:$0xff]
      %vm312 = vcmask 130048
      %v314 = vsel %vm312, %v308, 0
      %v317 = vsel %vm312, %v309, 0
      %319 = vmatprep.subr.mxu0 0.0
      %320 = vmatpush1.msra.mxu0 0.0
      %321 = vmatprep.subr.mxu0 0.0
      %322 = vmatpush1.msra.mxu0 0.0
      %323 = vmatprep.subr.mxu0 0.0
      %324 = vmatpush1.msra.mxu0 0.0
      %325 = vmatprep.subr.mxu0 0.0
      %326 = vmatpush1.msra.mxu0 0.0
      %327 = vmatprep.subr.mxu0 0.0
      %328 = vmatpush1.msra.mxu0 0.0
      %329 = vmatprep.subr.mxu0 0.0
      %330 = vmatpush1.msra.mxu0 0.0
      %331 = vmatprep.subr.mxu0 0.0
      %332 = vmatpush1.msra.mxu0 0.0
      %333 = vmatprep.subr.mxu0 0.0
      %334 = vmatpush1.msra.mxu0 0.0
      %335 = vmatprep.subr.mxu0 0.0
      %336 = vmatpush1.msra.mxu0 0.0
      %337 = vmatprep.subr.mxu0 0.0
      %338 = vmatpush1.msra.mxu0 0.0
      %339 = vmatprep.subr.mxu0 0.0
      %340 = vmatpush1.msra.mxu0 0.0
      %341 = vmatprep.subr.mxu0 0.0
      %342 = vmatpush1.msra.mxu0 0.0
      %343 = vmatprep.subr.mxu0 0.0
      %344 = vmatpush1.msra.mxu0 0.0
      %345 = vmatprep.subr.mxu0 0.0
      %346 = vmatpush1.msra.mxu0 0.0
      %347 = vmatprep.subr.mxu0 0.0
      %348 = vmatpush1.msra.mxu0 %v311
      %349 = vmatprep.subr.mxu0 0.0
      %350 = vmatpush1.msra.mxu0 %v310
      %351 = vmatprep.subr.mxu0 0.0
      %352 = vmatpush2.msra.mxu0 0.0
      %353 = vmatprep.subr.mxu0 0.0
      %354 = vmatpush2.msra.mxu0 0.0
      %355 = vmatprep.subr.mxu0 0.0
      %356 = vmatpush2.msra.mxu0 0.0
      %357 = vmatprep.subr.mxu0 0.0
      %358 = vmatpush2.msra.mxu0 0.0
      %359 = vmatprep.subr.mxu0 0.0
      %360 = vmatpush2.msra.mxu0 0.0
      %361 = vmatprep.subr.mxu0 0.0
      %362 = vmatpush2.msra.mxu0 0.0
      %363 = vmatprep.subr.mxu0 0.0
      %364 = vmatpush2.msra.mxu0 0.0
      %365 = vmatprep.subr.mxu0 0.0
      %366 = vmatpush2.msra.mxu0 0.0
      %367 = vmatprep.subr.mxu0 0.0
      %368 = vmatpush2.msra.mxu0 0.0
      %369 = vmatprep.subr.mxu0 0.0
      %370 = vmatpush2.msra.mxu0 0.0
      %371 = vmatprep.subr.mxu0 0.0
      %372 = vmatpush2.msra.mxu0 0.0
      %373 = vmatprep.subr.mxu0 0.0
      %374 = vmatpush2.msra.mxu0 0.0
      %375 = vmatprep.subr.mxu0 0.0
      %376 = vmatpush2.msra.mxu0 0.0
      %377 = vmatprep.subr.mxu0 0.0
      %378 = vmatpush2.msra.mxu0 0.0
      %379 = vmatprep.subr.mxu0 0.0
      %380 = vmatpush2.msra.mxu0 0.0
      %381 = vmatprep.subr.mxu0 0.0
      %382 = vmatpush2.msra.mxu0 0.0
      %383 = vmatprep.mubr.f32.mxu0 0.0
      %384 = vmatmul.mubr.f32.gmra.mxu0 %v314
      %v385 = vpop.f32.mrf.mxu0
      %v386 = vadd.f32 0.0, %v385
      %v387 = vpop.f32.mrf.mxu0
      %388 = vmatprep.mubr.f32.mxu0 0.0
      %389 = vmatmul.mubr.f32.gmra.mxu0 %v317
      %v390 = vpop.f32.mrf.mxu0
      %v391 = vadd.f32 0.0, %v390
      %v392 = vpop.f32.mrf.mxu0
      %393 = vdwg.mxu0
      %v395 = vsel %vm312, %v304, 0
      %v398 = vsel %vm312, %v305, 0
      %400 = vmatprep.subr.mxu0 0.0
      %401 = vmatpush1.msra.mxu0 0.0
      %402 = vmatprep.subr.mxu0 0.0
      %403 = vmatpush1.msra.mxu0 0.0
      %404 = vmatprep.subr.mxu0 0.0
      %405 = vmatpush1.msra.mxu0 0.0
      %406 = vmatprep.subr.mxu0 0.0
      %407 = vmatpush1.msra.mxu0 0.0
      %408 = vmatprep.subr.mxu0 0.0
      %409 = vmatpush1.msra.mxu0 0.0
      %410 = vmatprep.subr.mxu0 0.0
      %411 = vmatpush1.msra.mxu0 0.0
      %412 = vmatprep.subr.mxu0 0.0
      %413 = vmatpush1.msra.mxu0 0.0
      %414 = vmatprep.subr.mxu0 0.0
      %415 = vmatpush1.msra.mxu0 0.0
      %416 = vmatprep.subr.mxu0 0.0
      %417 = vmatpush1.msra.mxu0 0.0
      %418 = vmatprep.subr.mxu0 0.0
      %419 = vmatpush1.msra.mxu0 0.0
      %420 = vmatprep.subr.mxu0 0.0
      %421 = vmatpush1.msra.mxu0 0.0
      %422 = vmatprep.subr.mxu0 0.0
      %423 = vmatpush1.msra.mxu0 0.0
      %424 = vmatprep.subr.mxu0 0.0
      %425 = vmatpush1.msra.mxu0 0.0
      %426 = vmatprep.subr.mxu0 0.0
      %427 = vmatpush1.msra.mxu0 0.0
      %428 = vmatprep.subr.mxu0 0.0
      %429 = vmatpush1.msra.mxu0 %v307
      %430 = vmatprep.subr.mxu0 0.0
      %431 = vmatpush1.msra.mxu0 %v306
      %432 = vmatprep.subr.mxu0 0.0
      %433 = vmatpush2.msra.mxu0 0.0
      %434 = vmatprep.subr.mxu0 0.0
      %435 = vmatpush2.msra.mxu0 0.0
      %436 = vmatprep.subr.mxu0 0.0
      %437 = vmatpush2.msra.mxu0 0.0
      %438 = vmatprep.subr.mxu0 0.0
      %439 = vmatpush2.msra.mxu0 0.0
      %440 = vmatprep.subr.mxu0 0.0
      %441 = vmatpush2.msra.mxu0 0.0
      %442 = vmatprep.subr.mxu0 0.0
      %443 = vmatpush2.msra.mxu0 0.0
      %444 = vmatprep.subr.mxu0 0.0
      %445 = vmatpush2.msra.mxu0 0.0
      %446 = vmatprep.subr.mxu0 0.0
      %447 = vmatpush2.msra.mxu0 0.0
      %448 = vmatprep.subr.mxu0 0.0
      %449 = vmatpush2.msra.mxu0 0.0
      %450 = vmatprep.subr.mxu0 0.0
      %451 = vmatpush2.msra.mxu0 0.0
      %452 = vmatprep.subr.mxu0 0.0
      %453 = vmatpush2.msra.mxu0 0.0
      %454 = vmatprep.subr.mxu0 0.0
      %455 = vmatpush2.msra.mxu0 0.0
      %456 = vmatprep.subr.mxu0 0.0
      %457 = vmatpush2.msra.mxu0 0.0
      %458 = vmatprep.subr.mxu0 0.0
      %459 = vmatpush2.msra.mxu0 0.0
      %460 = vmatprep.subr.mxu0 0.0
      %461 = vmatpush2.msra.mxu0 0.0
      %462 = vmatprep.subr.mxu0 0.0
      %463 = vmatpush2.msra.mxu0 0.0
      %464 = vmatprep.mubr.f32.mxu0 0.0
      %465 = vmatmul.mubr.f32.gmra.mxu0 %v395
      %v466 = vpop.f32.mrf.mxu0
      %v467 = vadd.f32 %v386, %v466
      %v468 = vpop.f32.mrf.mxu0
      %469 = vmatprep.mubr.f32.mxu0 0.0
      %470 = vmatmul.mubr.f32.gmra.mxu0 %v398
      %v471 = vpop.f32.mrf.mxu0
      %v472 = vadd.f32 %v391, %v471
      %v473 = vpop.f32.mrf.mxu0
      %474 = vdwg.mxu0
      %v475 = vld [vmem:[%s4] sm:$0x1]
      %v477 = vlaneseq
      %v478 = vshrl.u32 %v477, 7
      %v479 = vsub.s32 0, %v478
      %v480 = vrot.slane %v475, %v479
      %v482 = vadd.f32 %v467, %v480
      %v483 = vadd.f32 %v472, %v480
      %v484 = vmax.f32 %v482, 0.0
      %v485 = vmax.f32 %v483, 0.0
      %v486 = vld [vmem:[%s5] sm:$0xff]
      %v487 = vld [vmem:[%s5 + $0x8] sm:$0xff]
      %v488 = vld [vmem:[%s5 + $0x10] sm:$0xff]
      %v489 = vld [vmem:[%s5 + $0x18] sm:$0xff]
      %v490 = vld [vmem:[%s5 + $0x20] sm:$0xff]
      %v491 = vld [vmem:[%s5 + $0x28] sm:$0xff]
      %v492 = vld [vmem:[%s5 + $0x30] sm:$0xff]
      %v493 = vld [vmem:[%s5 + $0x38] sm:$0xff]
      %v494 = vld [vmem:[%s5 + $0x40] sm:$0xff]
      %v495 = vld [vmem:[%s5 + $0x48] sm:$0xff]
      %v496 = vld [vmem:[%s5 + $0x50] sm:$0xff]
      %v497 = vld [vmem:[%s5 + $0x58] sm:$0xff]
      %v498 = vld [vmem:[%s5 + $0x60] sm:$0xff]
      %v499 = vld [vmem:[%s5 + $0x68] sm:$0xff]
      %v500 = vld [vmem:[%s5 + $0x70] sm:$0xff]
      %v501 = vld [vmem:[%s5 + $0x78] sm:$0xff]
      %v502 = vld [vmem:[%s6] sm:$0x1]
      %v504 = vlaneseq
      %v505 = vshrl.u32 %v504, 7
      %v506 = vsub.s32 0, %v505
      %v507 = vrot.slane %v502, %v506
      %509 = vmatprep.subr.mxu0 0.0
      %510 = vmatpush1.msra.mxu0 %v501
      %511 = vmatprep.subr.mxu0 0.0
      %512 = vmatpush1.msra.mxu0 %v500
      %513 = vmatprep.subr.mxu0 0.0
      %514 = vmatpush1.msra.mxu0 %v499
      %515 = vmatprep.subr.mxu0 0.0
      %516 = vmatpush1.msra.mxu0 %v498
      %517 = vmatprep.subr.mxu0 0.0
      %518 = vmatpush1.msra.mxu0 %v497
      %519 = vmatprep.subr.mxu0 0.0
      %520 = vmatpush1.msra.mxu0 %v496
      %521 = vmatprep.subr.mxu0 0.0
      %522 = vmatpush1.msra.mxu0 %v495
      %523 = vmatprep.subr.mxu0 0.0
      %524 = vmatpush1.msra.mxu0 %v494
      %525 = vmatprep.subr.mxu0 0.0
      %526 = vmatpush1.msra.mxu0 %v493
      %527 = vmatprep.subr.mxu0 0.0
      %528 = vmatpush1.msra.mxu0 %v492
      %529 = vmatprep.subr.mxu0 0.0
      %530 = vmatpush1.msra.mxu0 %v491
      %531 = vmatprep.subr.mxu0 0.0
      %532 = vmatpush1.msra.mxu0 %v490
      %533 = vmatprep.subr.mxu0 0.0
      %534 = vmatpush1.msra.mxu0 %v489
      %535 = vmatprep.subr.mxu0 0.0
      %536 = vmatpush1.msra.mxu0 %v488
      %537 = vmatprep.subr.mxu0 0.0
      %538 = vmatpush1.msra.mxu0 %v487
      %539 = vmatprep.subr.mxu0 0.0
      %540 = vmatpush1.msra.mxu0 %v486
      %541 = vmatprep.subr.mxu0 0.0
      %542 = vmatpush2.msra.mxu0 0.0
      %543 = vmatprep.subr.mxu0 0.0
      %544 = vmatpush2.msra.mxu0 0.0
      %545 = vmatprep.subr.mxu0 0.0
      %546 = vmatpush2.msra.mxu0 0.0
      %547 = vmatprep.subr.mxu0 0.0
      %548 = vmatpush2.msra.mxu0 0.0
      %549 = vmatprep.subr.mxu0 0.0
      %550 = vmatpush2.msra.mxu0 0.0
      %551 = vmatprep.subr.mxu0 0.0
      %552 = vmatpush2.msra.mxu0 0.0
      %553 = vmatprep.subr.mxu0 0.0
      %554 = vmatpush2.msra.mxu0 0.0
      %555 = vmatprep.subr.mxu0 0.0
      %556 = vmatpush2.msra.mxu0 0.0
      %557 = vmatprep.subr.mxu0 0.0
      %558 = vmatpush2.msra.mxu0 0.0
      %559 = vmatprep.subr.mxu0 0.0
      %560 = vmatpush2.msra.mxu0 0.0
      %561 = vmatprep.subr.mxu0 0.0
      %562 = vmatpush2.msra.mxu0 0.0
      %563 = vmatprep.subr.mxu0 0.0
      %564 = vmatpush2.msra.mxu0 0.0
      %565 = vmatprep.subr.mxu0 0.0
      %566 = vmatpush2.msra.mxu0 0.0
      %567 = vmatprep.subr.mxu0 0.0
      %568 = vmatpush2.msra.mxu0 0.0
      %569 = vmatprep.subr.mxu0 0.0
      %570 = vmatpush2.msra.mxu0 0.0
      %571 = vmatprep.subr.mxu0 0.0
      %572 = vmatpush2.msra.mxu0 0.0
      %573 = vmatprep.mubr.f32.mxu0 0.0
      %574 = vmatmul.mubr.f32.gmra.mxu0 %v484
      %v575 = vpop.f32.mrf.mxu0
      %v576 = vadd.f32 %v507, %v575
      %v577 = vpop.f32.mrf.mxu0
      %578 = vmatprep.mubr.f32.mxu0 0.0
      %579 = vmatmul.mubr.f32.gmra.mxu0 %v485
      %v580 = vpop.f32.mrf.mxu0
      %v581 = vadd.f32 %v507, %v580
      %v582 = vpop.f32.mrf.mxu0
      %583 = vdwg.mxu0
      %vm584 = vcmask 64512
      %585 = vst.msk [vmem:[%s302] sm:$0xff] %vm584, %v576
      %586 = vst.msk [vmem:[%s302 + $0x8] sm:$0xff] %vm584, %v581
      %s587 = smul.u32 2, %s18
      %p588 = scmp.lt.s32.totalorder %s587, 7
      %s589 = scalar_select %p588, %s587, 7
      %s590 = smul.addr %s589, 8
      %s591 = scalar_lea.vmem %s7, %s590
      // Predicated region
      $region49: #{tpu_custom_call.1} parent=47 // pred_check
        %p592 = pneg %p193
      $region50: #{tpu_custom_call.1} parent=47 // pred_check_branch
        %594 = sbr.rel (%p592) target = $region52
      $region51: #{tpu_custom_call.1} parent=47 // pred_region
        %s595 = smul.u32 2, %s18
      $region52: #{tpu_custom_call.1} parent=47 // pred_fallthru
        _
    $region48: #{tpu_custom_call.1} parent=5 // pred_fallthru
      _
    %p596 = scmp.le.s32.totalorder 2, %s13
    // Predicated region
    $region53: #{tpu_custom_call.1} parent=5 // pred_check
      %p597 = pneg %p596
    $region54: #{tpu_custom_call.1} parent=5 // pred_check_branch
      %599 = sbr.rel (%p597) target = $region56
    $region55: #{tpu_custom_call.1} parent=5 // pred_region
      %s600 = ssub.s32 %s13, 2
      // Predicated region
      $region57: #{tpu_custom_call.1} parent=55 // pred_check
        %p601 = pneg %p199
      $region58: #{tpu_custom_call.1} parent=55 // pred_check_branch
        %603 = sbr.rel (%p601) target = $region60
      $region59: #{tpu_custom_call.1} parent=55 // pred_region
        %s604 = smul.u32 2, %s19
        %p605 = scmp.lt.s32.totalorder %s604, 7
        %s606 = scalar_select %p605, %s604, 7
        %s607 = smul.addr %s606, 8
        %s608 = scalar_lea.vmem %s7, %s607
      $region60: #{tpu_custom_call.1} parent=55 // pred_fallthru
        _
    $region56: #{tpu_custom_call.1} parent=5 // pred_fallthru
      _
  $region6: #{tpu_custom_call.1} parent=0 // loop_footer
    %s17 = sadd.s32 1, %s13
  $region7: #{tpu_custom_call.1} parent=0 // loop_footer_branch
    %12 = sbr.rel target = $region3
  $region8: #{tpu_custom_call.1} parent=0 // loop_exit
    _

// kernel: tpu_custom_call.1
$region0: #{tpu_custom_call.1}
  #allocation0 [shape = 'u32[]', space=smem, size = 0x4, offset = 0x4, fixed_abs, tag = 'smem constant byte address 0x4 - core index']
  #allocation1 [shape = 'u32[144,128]{1,0:T(1,128)}', space=vmem, size = 0x12000, scoped, tag = 'internal scratch']
  %s0 = inlined_call_operand.vmem [shape: f32[64,16], index: 0, kind: input, shape index: {}]
  %s1 = inlined_call_operand.vmem [shape: f32[64,16], index: 1, kind: input, shape index: {}]
  %s2 = inlined_call_operand.vmem [shape: f32[16,128], index: 2, kind: input, shape index: {}]
  %s3 = inlined_call_operand.vmem [shape: f32[16,128], index: 3, kind: input, shape index: {}]
  %s4 = inlined_call_operand.vmem [shape: f32[1,128], index: 4, kind: input, shape index: {}]
  %s5 = inlined_call_operand.vmem [shape: f32[128,8], index: 5, kind: input, shape index: {}]
  %s6 = inlined_call_operand.vmem [shape: f32[1,8], index: 6, kind: input, shape index: {}]
  %s7 = inlined_call_operand.vmem [shape: f32[64,8], index: 7, kind: output, shape index: {}]
  %s8 = sld [smem:[#allocation0]]
  $region61: #{tpu_custom_call.1} parent=0
    _
  %s10 = ssub.s32 1, %s8
  %s11 = scalar_select 0, %s10, %s8
  loop: start=0, step=1, limit=6
  $region2: #{tpu_custom_call.1} parent=0 // loop_pre_header
    _
  $region3: #{tpu_custom_call.1} parent=0 // loop_header
    %s13 = sphi 0, %s17
    %p14 = scmp.ge.s32.totalorder %s13, 6
    %s23 = sphi 0, %s25
    %s26 = sphi 0, %s23
    %s27 = sphi 0, %s26
    %s43 = sphi 0, %s27
    %s49 = sphi 0, %s51
    %s52 = sphi 0, %s49
    %s53 = sphi 0, %s52
    %s69 = sphi 0, %s53
    %s73 = sphi 0, %s73
    %s75 = sphi 0, %s73
    %s76 = sphi 0, %s75
    %s90 = sphi 0, %s76
    %s94 = sphi 0, %s94
    %s96 = sphi 0, %s94
    %s97 = sphi 0, %s96
    %s111 = sphi 0, %s97
    %s115 = sphi 0, %s115
    %s117 = sphi 0, %s115
    %s118 = sphi 0, %s117
    %s132 = sphi 0, %s118
    %s136 = sphi 0, %s136
    %s138 = sphi 0, %s136
    %s139 = sphi 0, %s138
    %s153 = sphi 0, %s139
    %s157 = sphi 0, %s157
    %s159 = sphi 0, %s157
    %s160 = sphi 0, %s159
    %s174 = sphi 0, %s160
    %s180 = sphi 0, %s182
    %s183 = sphi 0, %s180
    %s184 = sphi 0, %s183
    %s200 = sphi 0, %s184
  $region4: #{tpu_custom_call.1} parent=0 // loop_header_branch
    %16 = sbr.rel (%p14) target = $region8
  $region5: #{tpu_custom_call.1} parent=0 // loop_body
    %s18 = ssub.s32 %s13, 1
    %s19 = ssub.s32 %s13, 2
    %s20 = sadd.s32 %s13, 1
    %s21 = ssub.s32 %s13, %s20
    %p22 = scmp.eq.s32.totalorder %s21, 0
    %s24 = sadd.s32 %s23, 1
    %s25 = scalar_select %p22, %s23, %s24
    %p28 = pneg %p22
    %p29 = scmp.eq.s32.totalorder %s13, 3
    %p30 = por %p28, %p29
    %p31 = scmp.ne.s32.totalorder %s23, %s26
    %p32 = scmp.eq.s32.totalorder %s13, 0
    %p33 = por %p31, %p32
    %p34 = scmp.ne.s32.totalorder %s23, %s26
    %p35 = scmp.eq.s32.totalorder %s18, 3
    %p36 = por %p34, %p35
    %p37 = scmp.ne.s32.totalorder %s26, %s27
    %p38 = scmp.eq.s32.totalorder %s18, 0
    %p39 = por %p37, %p38
    %p40 = scmp.ne.s32.totalorder %s26, %s27
    %p41 = scmp.eq.s32.totalorder %s19, 3
    %p42 = por %p40, %p41
    %p44 = scmp.ne.s32.totalorder %s27, %s43
    %p45 = scmp.eq.s32.totalorder %s19, 0
    %p46 = por %p44, %p45
    %s47 = ssub.s32 %s13, %s20
    %p48 = scmp.eq.s32.totalorder %s47, 0
    %s50 = sadd.s32 %s49, 1
    %s51 = scalar_select %p48, %s49, %s50
    %p54 = pneg %p48
    %p55 = scmp.eq.s32.totalorder %s13, 3
    %p56 = por %p54, %p55
    %p57 = scmp.ne.s32.totalorder %s49, %s52
    %p58 = scmp.eq.s32.totalorder %s13, 0
    %p59 = por %p57, %p58
    %p60 = scmp.ne.s32.totalorder %s49, %s52
    %p61 = scmp.eq.s32.totalorder %s18, 3
    %p62 = por %p60, %p61
    %p63 = scmp.ne.s32.totalorder %s52, %s53
    %p64 = scmp.eq.s32.totalorder %s18, 0
    %p65 = por %p63, %p64
    %p66 = scmp.ne.s32.totalorder %s52, %s53
    %p67 = scmp.eq.s32.totalorder %s19, 3
    %p68 = por %p66, %p67
    %p70 = scmp.ne.s32.totalorder %s53, %s69
    %p71 = scmp.eq.s32.totalorder %s19, 0
    %p72 = por %p70, %p71
    %s74 = sadd.s32 %s73, 1
    %p77 = scmp.eq.s32.totalorder %s13, 3
    %p78 = scmp.ne.s32.totalorder %s73, %s75
    %p79 = scmp.eq.s32.totalorder %s13, 0
    %p80 = por %p78, %p79
    %p81 = scmp.ne.s32.totalorder %s73, %s75
    %p82 = scmp.eq.s32.totalorder %s18, 3
    %p83 = por %p81, %p82
    %p84 = scmp.ne.s32.totalorder %s75, %s76
    %p85 = scmp.eq.s32.totalorder %s18, 0
    %p86 = por %p84, %p85
    %p87 = scmp.ne.s32.totalorder %s75, %s76
    %p88 = scmp.eq.s32.totalorder %s19, 3
    %p89 = por %p87, %p88
    %p91 = scmp.ne.s32.totalorder %s76, %s90
    %p92 = scmp.eq.s32.totalorder %s19, 0
    %p93 = por %p91, %p92
    %s95 = sadd.s32 %s94, 1
    %p98 = scmp.eq.s32.totalorder %s13, 3
    %p99 = scmp.ne.s32.totalorder %s94, %s96
    %p100 = scmp.eq.s32.totalorder %s13, 0
    %p101 = por %p99, %p100
    %p102 = scmp.ne.s32.totalorder %s94, %s96
    %p103 = scmp.eq.s32.totalorder %s18, 3
    %p104 = por %p102, %p103
    %p105 = scmp.ne.s32.totalorder %s96, %s97
    %p106 = scmp.eq.s32.totalorder %s18, 0
    %p107 = por %p105, %p106
    %p108 = scmp.ne.s32.totalorder %s96, %s97
    %p109 = scmp.eq.s32.totalorder %s19, 3
    %p110 = por %p108, %p109
    %p112 = scmp.ne.s32.totalorder %s97, %s111
    %p113 = scmp.eq.s32.totalorder %s19, 0
    %p114 = por %p112, %p113
    %s116 = sadd.s32 %s115, 1
    %p119 = scmp.eq.s32.totalorder %s13, 3
    %p120 = scmp.ne.s32.totalorder %s115, %s117
    %p121 = scmp.eq.s32.totalorder %s13, 0
    %p122 = por %p120, %p121
    %p123 = scmp.ne.s32.totalorder %s115, %s117
    %p124 = scmp.eq.s32.totalorder %s18, 3
    %p125 = por %p123, %p124
    %p126 = scmp.ne.s32.totalorder %s117, %s118
    %p127 = scmp.eq.s32.totalorder %s18, 0
    %p128 = por %p126, %p127
    %p129 = scmp.ne.s32.totalorder %s117, %s118
    %p130 = scmp.eq.s32.totalorder %s19, 3
    %p131 = por %p129, %p130
    %p133 = scmp.ne.s32.totalorder %s118, %s132
    %p134 = scmp.eq.s32.totalorder %s19, 0
    %p135 = por %p133, %p134
    %s137 = sadd.s32 %s136, 1
    %p140 = scmp.eq.s32.totalorder %s13, 3
    %p141 = scmp.ne.s32.totalorder %s136, %s138
    %p142 = scmp.eq.s32.totalorder %s13, 0
    %p143 = por %p141, %p142
    %p144 = scmp.ne.s32.totalorder %s136, %s138
    %p145 = scmp.eq.s32.totalorder %s18, 3
    %p146 = por %p144, %p145
    %p147 = scmp.ne.s32.totalorder %s138, %s139
    %p148 = scmp.eq.s32.totalorder %s18, 0
    %p149 = por %p147, %p148
    %p150 = scmp.ne.s32.totalorder %s138, %s139
    %p151 = scmp.eq.s32.totalorder %s19, 3
    %p152 = por %p150, %p151
    %p154 = scmp.ne.s32.totalorder %s139, %s153
    %p155 = scmp.eq.s32.totalorder %s19, 0
    %p156 = por %p154, %p155
    %s158 = sadd.s32 %s157, 1
    %p161 = scmp.eq.s32.totalorder %s13, 3
    %p162 = scmp.ne.s32.totalorder %s157, %s159
    %p163 = scmp.eq.s32.totalorder %s13, 0
    %p164 = por %p162, %p163
    %p165 = scmp.ne.s32.totalorder %s157, %s159
    %p166 = scmp.eq.s32.totalorder %s18, 3
    %p167 = por %p165, %p166
    %p168 = scmp.ne.s32.totalorder %s159, %s160
    %p169 = scmp.eq.s32.totalorder %s18, 0
    %p170 = por %p168, %p169
    %p171 = scmp.ne.s32.totalorder %s159, %s160
    %p172 = scmp.eq.s32.totalorder %s19, 3
    %p173 = por %p171, %p172
    %p175 = scmp.ne.s32.totalorder %s160, %s174
    %p176 = scmp.eq.s32.totalorder %s19, 0
    %p177 = por %p175, %p176
    %s178 = ssub.s32 %s13, %s20
    %p179 = scmp.eq.s32.totalorder %s178, 0
    %s181 = sadd.s32 %s180, 1
    %s182 = scalar_select %p179, %s180, %s181
    %p185 = pneg %p179
    %p186 = scmp.eq.s32.totalorder %s13, 3
    %p187 = por %p185, %p186
    %p188 = scmp.ne.s32.totalorder %s180, %s183
    %p189 = scmp.eq.s32.totalorder %s13, 0
    %p190 = por %p188, %p189
    %p191 = scmp.ne.s32.totalorder %s180, %s183
    %p192 = scmp.eq.s32.totalorder %s18, 3
    %p193 = por %p191, %p192
    %p194 = scmp.ne.s32.totalorder %s183, %s184
    %p195 = scmp.eq.s32.totalorder %s18, 0
    %p196 = por %p194, %p195
    %p197 = scmp.ne.s32.totalorder %s183, %s184
    %p198 = scmp.eq.s32.totalorder %s19, 3
    %p199 = por %p197, %p198
    %p201 = scmp.ne.s32.totalorder %s184, %s200
    %p202 = scmp.eq.s32.totalorder %s19, 0
    %p203 = por %p201, %p202
    %p204 = scmp.le.s32.totalorder 1, %s13
    %p205 = scmp.lt.s32.totalorder %s13, 5
    %p206 = pnand %p204, %p205
    %p207 = pneg %p206
    // Predicated region
    $region9: #{tpu_custom_call.1} parent=5 // pred_check
      _
    $region10: #{tpu_custom_call.1} parent=5 // pred_check_branch
      %209 = sbr.rel (%p206) target = $region12
    $region11: #{tpu_custom_call.1} parent=5 // pred_region
      %s210 = ssub.s32 %s13, 1
      // Predicated region
      $region13: #{tpu_custom_call.1} parent=11 // pred_check
        %p211 = pneg %p86
      $region14: #{tpu_custom_call.1} parent=11 // pred_check_branch
        %213 = sbr.rel (%p211) target = $region16
      $region15: #{tpu_custom_call.1} parent=11 // pred_region
        _
      $region16: #{tpu_custom_call.1} parent=11 // pred_fallthru
        _
      // Predicated region
      $region17: #{tpu_custom_call.1} parent=11 // pred_check
        %p214 = pneg %p107
      $region18: #{tpu_custom_call.1} parent=11 // pred_check_branch
        %216 = sbr.rel (%p214) target = $region20
      $region19: #{tpu_custom_call.1} parent=11 // pred_region
        _
      $region20: #{tpu_custom_call.1} parent=11 // pred_fallthru
        _
      // Predicated region
      $region21: #{tpu_custom_call.1} parent=11 // pred_check
        %p217 = pneg %p128
      $region22: #{tpu_custom_call.1} parent=11 // pred_check_branch
        %219 = sbr.rel (%p217) target = $region24
      $region23: #{tpu_custom_call.1} parent=11 // pred_region
        _
      $region24: #{tpu_custom_call.1} parent=11 // pred_fallthru
        _
      // Predicated region
      $region25: #{tpu_custom_call.1} parent=11 // pred_check
        %p220 = pneg %p149
      $region26: #{tpu_custom_call.1} parent=11 // pred_check_branch
        %222 = sbr.rel (%p220) target = $region28
      $region27: #{tpu_custom_call.1} parent=11 // pred_region
        _
      $region28: #{tpu_custom_call.1} parent=11 // pred_fallthru
        _
      // Predicated region
      $region29: #{tpu_custom_call.1} parent=11 // pred_check
        %p223 = pneg %p170
      $region30: #{tpu_custom_call.1} parent=11 // pred_check_branch
        %225 = sbr.rel (%p223) target = $region32
      $region31: #{tpu_custom_call.1} parent=11 // pred_region
        _
      $region32: #{tpu_custom_call.1} parent=11 // pred_fallthru
        _
    $region12: #{tpu_custom_call.1} parent=5 // pred_fallthru
      _
    %p226 = scmp.lt.s32.totalorder %s13, 4
    // Predicated region
    $region33: #{tpu_custom_call.1} parent=5 // pred_check
      %p227 = pneg %p226
    $region34: #{tpu_custom_call.1} parent=5 // pred_check_branch
      %229 = sbr.rel (%p227) target = $region36
    $region35: #{tpu_custom_call.1} parent=5 // pred_region
      // Predicated region
      $region37: #{tpu_custom_call.1} parent=35 // pred_check
        %p230 = pneg %p33
      $region38: #{tpu_custom_call.1} parent=35 // pred_check_branch
        %232 = sbr.rel (%p230) target = $region40
      $region39: #{tpu_custom_call.1} parent=35 // pred_region
        %s233 = smul.u32 2, %s13
        %p234 = scmp.lt.s32.totalorder %s233, 7
        %s235 = scalar_select %p234, %s233, 7
        %s236 = smul.addr %s235, 8
        %s237 = scalar_lea.vmem %s0, %s236
        %s238 = smul.u32 2, %s13
      $region40: #{tpu_custom_call.1} parent=35 // pred_fallthru
        _
      // Predicated region
      $region41: #{tpu_custom_call.1} parent=35 // pred_check
        %p239 = pneg %p59
      $region42: #{tpu_custom_call.1} parent=35 // pred_check_branch
        %241 = sbr.rel (%p239) target = $region44
      $region43: #{tpu_custom_call.1} parent=35 // pred_region
        %s242 = smul.u32 2, %s13
        %p243 = scmp.lt.s32.totalorder %s242, 7
        %s244 = scalar_select %p243, %s242, 7
        %s245 = smul.addr %s244, 8
        %s246 = scalar_lea.vmem %s1, %s245
        %s247 = smul.u32 2, %s13
      $region44: #{tpu_custom_call.1} parent=35 // pred_fallthru
        _
    $region36: #{tpu_custom_call.1} parent=5 // pred_fallthru
      _
    %p248 = scmp.le.s32.totalorder 1, %s13
    %p249 = scmp.lt.s32.totalorder %s13, 5
    %p250 = pnand %p248, %p249
    %p251 = pneg %p250
    // Predicated region
    $region45: #{tpu_custom_call.1} parent=5 // pred_check
      _
    $region46: #{tpu_custom_call.1} parent=5 // pred_check_branch
      %253 = sbr.rel (%p250) target = $region48
    $region47: #{tpu_custom_call.1} parent=5 // pred_region
      %s254 = ssub.s32 %s13, 1
      %s255 = smul.u32 2, %s18
      %p256 = scmp.lt.s32.totalorder %s255, 7
      %s257 = scalar_select %p256, %s255, 7
      %s258 = smul.addr %s257, 8
      %s259 = scalar_lea.vmem %s0, %s258
      %p260 = pneg %p39
      %p261 = pneg %p36
      %s262 = smul.u32 2, %s18
      %p263 = scmp.lt.s32.totalorder %s262, 7
      %s264 = scalar_select %p263, %s262, 7
      %s265 = smul.addr %s264, 8
      %s266 = scalar_lea.vmem %s1, %s265
      %p267 = pneg %p65
      %p268 = pneg %p62
      %p269 = pneg %p86
      %p270 = pneg %p83
      %p271 = pneg %p107
      %p272 = pneg %p104
      %p273 = pneg %p128
      %p274 = pneg %p125
      %p275 = pneg %p149
      %p276 = pneg %p146
      %p277 = pneg %p170
      %p278 = pneg %p167
      %p279 = pneg %p196
      %p280 = pneg %p193
      %s281 = smul.u32 2, %s18
      %p282 = scmp.lt.s32.totalorder %s281, 7
      %s283 = scalar_select %p282, %s281, 7
      %s284 = smul.addr %s283, 8
      %s285 = scalar_lea.vmem %s7, %s284
      %s286 = smul.u32 2, %s18
      %p287 = scmp.lt.s32.totalorder %s286, 7
      %s288 = scalar_select %p287, %s286, 7
      %s289 = smul.addr %s288, 8
      %s290 = scalar_lea.vmem %s0, %s289
      %s291 = smul.u32 2, %s18
      %s292 = smul.u32 2, %s18
      %p293 = scmp.lt.s32.totalorder %s292, 7
      %s294 = scalar_select %p293, %s292, 7
      %s295 = smul.addr %s294, 8
      %s296 = scalar_lea.vmem %s1, %s295
      %s297 = smul.u32 2, %s18
      %s298 = smul.u32 2, %s18
      %p299 = scmp.lt.s32.totalorder %s298, 7
      %s300 = scalar_select %p299, %s298, 7
      %s301 = smul.addr %s300, 8
      %s302 = scalar_lea.vmem %s7, %s301
      %s303 = smul.u32 2, %s18
      %v304 = vld [vmem:[%s290] sm:$0xff]
      %v305 = vld [vmem:[%s290 + $0x8] sm:$0xff]
      %v306 = vld [vmem:[%s2] sm:$0xff]
      %v307 = vld [vmem:[%s2 + $0x8] sm:$0xff]
      %v308 = vld [vmem:[%s296] sm:$0xff]
      %v309 = vld [vmem:[%s296 + $0x8] sm:$0xff]
      %v310 = vld [vmem:[%s3] sm:$0xff]
      %v311 = vld [vmem:[%s3 + $0x8] sm:$0xff]
      %vm312 = vcmask 130048
      %v314 = vsel %vm312, %v308, 0
      %v317 = vsel %vm312, %v309, 0
      %319 = vmatprep.subr.mxu0 0.0
      %320 = vmatpush1.msra.mxu0 0.0
      %321 = vmatprep.subr.mxu0 0.0
      %322 = vmatpush1.msra.mxu0 0.0
      %323 = vmatprep.subr.mxu0 0.0
      %324 = vmatpush1.msra.mxu0 0.0
      %325 = vmatprep.subr.mxu0 0.0
      %326 = vmatpush1.msra.mxu0 0.0
      %327 = vmatprep.subr.mxu0 0.0
      %328 = vmatpush1.msra.mxu0 0.0
      %329 = vmatprep.subr.mxu0 0.0
      %330 = vmatpush1.msra.mxu0 0.0
      %331 = vmatprep.subr.mxu0 0.0
      %332 = vmatpush1.msra.mxu0 0.0
      %333 = vmatprep.subr.mxu0 0.0
      %334 = vmatpush1.msra.mxu0 0.0
      %335 = vmatprep.subr.mxu0 0.0
      %336 = vmatpush1.msra.mxu0 0.0
      %337 = vmatprep.subr.mxu0 0.0
      %338 = vmatpush1.msra.mxu0 0.0
      %339 = vmatprep.subr.mxu0 0.0
      %340 = vmatpush1.msra.mxu0 0.0
      %341 = vmatprep.subr.mxu0 0.0
      %342 = vmatpush1.msra.mxu0 0.0
      %343 = vmatprep.subr.mxu0 0.0
      %344 = vmatpush1.msra.mxu0 0.0
      %345 = vmatprep.subr.mxu0 0.0
      %346 = vmatpush1.msra.mxu0 0.0
      %347 = vmatprep.subr.mxu0 0.0
      %348 = vmatpush1.msra.mxu0 %v311
      %349 = vmatprep.subr.mxu0 0.0
      %350 = vmatpush1.msra.mxu0 %v310
      %351 = vmatprep.subr.mxu0 0.0
      %352 = vmatpush2.msra.mxu0 0.0
      %353 = vmatprep.subr.mxu0 0.0
      %354 = vmatpush2.msra.mxu0 0.0
      %355 = vmatprep.subr.mxu0 0.0
      %356 = vmatpush2.msra.mxu0 0.0
      %357 = vmatprep.subr.mxu0 0.0
      %358 = vmatpush2.msra.mxu0 0.0
      %359 = vmatprep.subr.mxu0 0.0
      %360 = vmatpush2.msra.mxu0 0.0
      %361 = vmatprep.subr.mxu0 0.0
      %362 = vmatpush2.msra.mxu0 0.0
      %363 = vmatprep.subr.mxu0 0.0
      %364 = vmatpush2.msra.mxu0 0.0
      %365 = vmatprep.subr.mxu0 0.0
      %366 = vmatpush2.msra.mxu0 0.0
      %367 = vmatprep.subr.mxu0 0.0
      %368 = vmatpush2.msra.mxu0 0.0
      %369 = vmatprep.subr.mxu0 0.0
      %370 = vmatpush2.msra.mxu0 0.0
      %371 = vmatprep.subr.mxu0 0.0
      %372 = vmatpush2.msra.mxu0 0.0
      %373 = vmatprep.subr.mxu0 0.0
      %374 = vmatpush2.msra.mxu0 0.0
      %375 = vmatprep.subr.mxu0 0.0
      %376 = vmatpush2.msra.mxu0 0.0
      %377 = vmatprep.subr.mxu0 0.0
      %378 = vmatpush2.msra.mxu0 0.0
      %379 = vmatprep.subr.mxu0 0.0
      %380 = vmatpush2.msra.mxu0 0.0
      %381 = vmatprep.subr.mxu0 0.0
      %382 = vmatpush2.msra.mxu0 0.0
      %383 = vmatprep.mubr.f32.mxu0 0.0
      %384 = vmatmul.mubr.f32.gmra.mxu0 %v314
      %v385 = vpop.f32.mrf.mxu0
      %v386 = vadd.f32 0.0, %v385
      %v387 = vpop.f32.mrf.mxu0
      %388 = vmatprep.mubr.f32.mxu0 0.0
      %389 = vmatmul.mubr.f32.gmra.mxu0 %v317
      %v390 = vpop.f32.mrf.mxu0
      %v391 = vadd.f32 0.0, %v390
      %v392 = vpop.f32.mrf.mxu0
      %393 = vdwg.mxu0
      %v395 = vsel %vm312, %v304, 0
      %v398 = vsel %vm312, %v305, 0
      %400 = vmatprep.subr.mxu0 0.0
      %401 = vmatpush1.msra.mxu0 0.0
      %402 = vmatprep.subr.mxu0 0.0
      %403 = vmatpush1.msra.mxu0 0.0
      %404 = vmatprep.subr.mxu0 0.0
      %405 = vmatpush1.msra.mxu0 0.0
      %406 = vmatprep.subr.mxu0 0.0
      %407 = vmatpush1.msra.mxu0 0.0
      %408 = vmatprep.subr.mxu0 0.0
      %409 = vmatpush1.msra.mxu0 0.0
      %410 = vmatprep.subr.mxu0 0.0
      %411 = vmatpush1.msra.mxu0 0.0
      %412 = vmatprep.subr.mxu0 0.0
      %413 = vmatpush1.msra.mxu0 0.0
      %414 = vmatprep.subr.mxu0 0.0
      %415 = vmatpush1.msra.mxu0 0.0
      %416 = vmatprep.subr.mxu0 0.0
      %417 = vmatpush1.msra.mxu0 0.0
      %418 = vmatprep.subr.mxu0 0.0
      %419 = vmatpush1.msra.mxu0 0.0
      %420 = vmatprep.subr.mxu0 0.0
      %421 = vmatpush1.msra.mxu0 0.0
      %422 = vmatprep.subr.mxu0 0.0
      %423 = vmatpush1.msra.mxu0 0.0
      %424 = vmatprep.subr.mxu0 0.0
      %425 = vmatpush1.msra.mxu0 0.0
      %426 = vmatprep.subr.mxu0 0.0
      %427 = vmatpush1.msra.mxu0 0.0
      %428 = vmatprep.subr.mxu0 0.0
      %429 = vmatpush1.msra.mxu0 %v307
      %430 = vmatprep.subr.mxu0 0.0
      %431 = vmatpush1.msra.mxu0 %v306
      %432 = vmatprep.subr.mxu0 0.0
      %433 = vmatpush2.msra.mxu0 0.0
      %434 = vmatprep.subr.mxu0 0.0
      %435 = vmatpush2.msra.mxu0 0.0
      %436 = vmatprep.subr.mxu0 0.0
      %437 = vmatpush2.msra.mxu0 0.0
      %438 = vmatprep.subr.mxu0 0.0
      %439 = vmatpush2.msra.mxu0 0.0
      %440 = vmatprep.subr.mxu0 0.0
      %441 = vmatpush2.msra.mxu0 0.0
      %442 = vmatprep.subr.mxu0 0.0
      %443 = vmatpush2.msra.mxu0 0.0
      %444 = vmatprep.subr.mxu0 0.0
      %445 = vmatpush2.msra.mxu0 0.0
      %446 = vmatprep.subr.mxu0 0.0
      %447 = vmatpush2.msra.mxu0 0.0
      %448 = vmatprep.subr.mxu0 0.0
      %449 = vmatpush2.msra.mxu0 0.0
      %450 = vmatprep.subr.mxu0 0.0
      %451 = vmatpush2.msra.mxu0 0.0
      %452 = vmatprep.subr.mxu0 0.0
      %453 = vmatpush2.msra.mxu0 0.0
      %454 = vmatprep.subr.mxu0 0.0
      %455 = vmatpush2.msra.mxu0 0.0
      %456 = vmatprep.subr.mxu0 0.0
      %457 = vmatpush2.msra.mxu0 0.0
      %458 = vmatprep.subr.mxu0 0.0
      %459 = vmatpush2.msra.mxu0 0.0
      %460 = vmatprep.subr.mxu0 0.0
      %461 = vmatpush2.msra.mxu0 0.0
      %462 = vmatprep.subr.mxu0 0.0
      %463 = vmatpush2.msra.mxu0 0.0
      %464 = vmatprep.mubr.f32.mxu0 0.0
      %465 = vmatmul.mubr.f32.gmra.mxu0 %v395
      %v466 = vpop.f32.mrf.mxu0
      %v467 = vadd.f32 %v386, %v466
      %v468 = vpop.f32.mrf.mxu0
      %469 = vmatprep.mubr.f32.mxu0 0.0
      %470 = vmatmul.mubr.f32.gmra.mxu0 %v398
      %v471 = vpop.f32.mrf.mxu0
      %v472 = vadd.f32 %v391, %v471
      %v473 = vpop.f32.mrf.mxu0
      %474 = vdwg.mxu0
      %v475 = vld [vmem:[%s4] sm:$0x1]
      %v477 = vlaneseq
      %v478 = vshrl.u32 %v477, 7
      %v479 = vsub.s32 0, %v478
      %v480 = vrot.slane %v475, %v479
      %v482 = vadd.f32 %v467, %v480
      %v483 = vadd.f32 %v472, %v480
      %v484 = vmax.f32 %v482, 0.0
      %v485 = vmax.f32 %v483, 0.0
      %v486 = vld [vmem:[%s5] sm:$0xff]
      %v487 = vld [vmem:[%s5 + $0x8] sm:$0xff]
      %v488 = vld [vmem:[%s5 + $0x10] sm:$0xff]
      %v489 = vld [vmem:[%s5 + $0x18] sm:$0xff]
      %v490 = vld [vmem:[%s5 + $0x20] sm:$0xff]
      %v491 = vld [vmem:[%s5 + $0x28] sm:$0xff]
      %v492 = vld [vmem:[%s5 + $0x30] sm:$0xff]
      %v493 = vld [vmem:[%s5 + $0x38] sm:$0xff]
      %v494 = vld [vmem:[%s5 + $0x40] sm:$0xff]
      %v495 = vld [vmem:[%s5 + $0x48] sm:$0xff]
      %v496 = vld [vmem:[%s5 + $0x50] sm:$0xff]
      %v497 = vld [vmem:[%s5 + $0x58] sm:$0xff]
      %v498 = vld [vmem:[%s5 + $0x60] sm:$0xff]
      %v499 = vld [vmem:[%s5 + $0x68] sm:$0xff]
      %v500 = vld [vmem:[%s5 + $0x70] sm:$0xff]
      %v501 = vld [vmem:[%s5 + $0x78] sm:$0xff]
      %v502 = vld [vmem:[%s6] sm:$0x1]
      %v504 = vlaneseq
      %v505 = vshrl.u32 %v504, 7
      %v506 = vsub.s32 0, %v505
      %v507 = vrot.slane %v502, %v506
      %509 = vmatprep.subr.mxu0 0.0
      %510 = vmatpush1.msra.mxu0 %v501
      %511 = vmatprep.subr.mxu0 0.0
      %512 = vmatpush1.msra.mxu0 %v500
      %513 = vmatprep.subr.mxu0 0.0
      %514 = vmatpush1.msra.mxu0 %v499
      %515 = vmatprep.subr.mxu0 0.0
      %516 = vmatpush1.msra.mxu0 %v498
      %517 = vmatprep.subr.mxu0 0.0
      %518 = vmatpush1.msra.mxu0 %v497
      %519 = vmatprep.subr.mxu0 0.0
      %520 = vmatpush1.msra.mxu0 %v496
      %521 = vmatprep.subr.mxu0 0.0
      %522 = vmatpush1.msra.mxu0 %v495
      %523 = vmatprep.subr.mxu0 0.0
      %524 = vmatpush1.msra.mxu0 %v494
      %525 = vmatprep.subr.mxu0 0.0
      %526 = vmatpush1.msra.mxu0 %v493
      %527 = vmatprep.subr.mxu0 0.0
      %528 = vmatpush1.msra.mxu0 %v492
      %529 = vmatprep.subr.mxu0 0.0
      %530 = vmatpush1.msra.mxu0 %v491
      %531 = vmatprep.subr.mxu0 0.0
      %532 = vmatpush1.msra.mxu0 %v490
      %533 = vmatprep.subr.mxu0 0.0
      %534 = vmatpush1.msra.mxu0 %v489
      %535 = vmatprep.subr.mxu0 0.0
      %536 = vmatpush1.msra.mxu0 %v488
      %537 = vmatprep.subr.mxu0 0.0
      %538 = vmatpush1.msra.mxu0 %v487
      %539 = vmatprep.subr.mxu0 0.0
      %540 = vmatpush1.msra.mxu0 %v486
      %541 = vmatprep.subr.mxu0 0.0
      %542 = vmatpush2.msra.mxu0 0.0
      %543 = vmatprep.subr.mxu0 0.0
      %544 = vmatpush2.msra.mxu0 0.0
      %545 = vmatprep.subr.mxu0 0.0
      %546 = vmatpush2.msra.mxu0 0.0
      %547 = vmatprep.subr.mxu0 0.0
      %548 = vmatpush2.msra.mxu0 0.0
      %549 = vmatprep.subr.mxu0 0.0
      %550 = vmatpush2.msra.mxu0 0.0
      %551 = vmatprep.subr.mxu0 0.0
      %552 = vmatpush2.msra.mxu0 0.0
      %553 = vmatprep.subr.mxu0 0.0
      %554 = vmatpush2.msra.mxu0 0.0
      %555 = vmatprep.subr.mxu0 0.0
      %556 = vmatpush2.msra.mxu0 0.0
      %557 = vmatprep.subr.mxu0 0.0
      %558 = vmatpush2.msra.mxu0 0.0
      %559 = vmatprep.subr.mxu0 0.0
      %560 = vmatpush2.msra.mxu0 0.0
      %561 = vmatprep.subr.mxu0 0.0
      %562 = vmatpush2.msra.mxu0 0.0
      %563 = vmatprep.subr.mxu0 0.0
      %564 = vmatpush2.msra.mxu0 0.0
      %565 = vmatprep.subr.mxu0 0.0
      %566 = vmatpush2.msra.mxu0 0.0
      %567 = vmatprep.subr.mxu0 0.0
      %568 = vmatpush2.msra.mxu0 0.0
      %569 = vmatprep.subr.mxu0 0.0
      %570 = vmatpush2.msra.mxu0 0.0
      %571 = vmatprep.subr.mxu0 0.0
      %572 = vmatpush2.msra.mxu0 0.0
      %573 = vmatprep.mubr.f32.mxu0 0.0
      %574 = vmatmul.mubr.f32.gmra.mxu0 %v484
      %v575 = vpop.f32.mrf.mxu0
      %v576 = vadd.f32 %v507, %v575
      %v577 = vpop.f32.mrf.mxu0
      %578 = vmatprep.mubr.f32.mxu0 0.0
      %579 = vmatmul.mubr.f32.gmra.mxu0 %v485
      %v580 = vpop.f32.mrf.mxu0
      %v581 = vadd.f32 %v507, %v580
      %v582 = vpop.f32.mrf.mxu0
      %583 = vdwg.mxu0
      %vm584 = vcmask 64512
      %585 = vst.msk [vmem:[%s302] sm:$0xff] %vm584, %v576
      %586 = vst.msk [vmem:[%s302 + $0x8] sm:$0xff] %vm584, %v581
      %s587 = smul.u32 2, %s18
      %p588 = scmp.lt.s32.totalorder %s587, 7
      %s589 = scalar_select %p588, %s587, 7
      %s590 = smul.addr %s589, 8
      %s591 = scalar_lea.vmem %s7, %s590
      // Predicated region
      $region49: #{tpu_custom_call.1} parent=47 // pred_check
        %p592 = pneg %p193
      $region50: #{tpu_custom_call.1} parent=47 // pred_check_branch
        %594 = sbr.rel (%p592) target = $region52
      $region51: #{tpu_custom_call.1} parent=47 // pred_region
        %s595 = smul.u32 2, %s18
      $region52: #{tpu_custom_call.1} parent=47 // pred_fallthru
        _
    $region48: #{tpu_custom_call.1} parent=5 // pred_fallthru
      _
    %p596 = scmp.le.s32.totalorder 2, %s13
    // Predicated region
    $region53: #{tpu_custom_call.1} parent=5 // pred_check
      %p597 = pneg %p596
    $region54: #{tpu_custom_call.1} parent=5 // pred_check_branch
      %599 = sbr.rel (%p597) target = $region56
    $region55: #{tpu_custom_call.1} parent=5 // pred_region
      %s600 = ssub.s32 %s13, 2
      // Predicated region
      $region57: #{tpu_custom_call.1} parent=55 // pred_check
        %p601 = pneg %p199
      $region58: #{tpu_custom_call.1} parent=55 // pred_check_branch
        %603 = sbr.rel (%p601) target = $region60
      $region59: #{tpu_custom_call.1} parent=55 // pred_region
        %s604 = smul.u32 2, %s19
        %p605 = scmp.lt.s32.totalorder %s604, 7
        %s606 = scalar_select %p605, %s604, 7
        %s607 = smul.addr %s606, 8
        %s608 = scalar_lea.vmem %s7, %s607
      $region60: #{tpu_custom_call.1} parent=55 // pred_fallthru
        _
    $region56: #{tpu_custom_call.1} parent=5 // pred_fallthru
      _
  $region6: #{tpu_custom_call.1} parent=0 // loop_footer
    %s17 = sadd.s32 1, %s13
  $region7: #{tpu_custom_call.1} parent=0 // loop_footer_branch
    %12 = sbr.rel target = $region3
  $region8: #{tpu_custom_call.1} parent=0 // loop_exit
    _

</llo_original>
